<compile_context>
chip_gen: v6e
topology: v6e:2x2x1
jax: 0.10.0
libtpu: 0.0.40
codegen_flags: <defaults>
</compile_context>

<pallas_src>
import jax
import jax.numpy as jnp
from jax.experimental import pallas as pl
from jax.experimental.pallas import tpu as pltpu

_EPS = 1e-12                      # matches F.normalize default eps / clamp_min
_LANE = 128                       # TPU lane width
_TN_MAX = 512                     # max out-feature tile width
_VMEM_BUDGET = 12 * 1024 * 1024   # conservative vs v5e's 16 MiB scoped default


def _cosine_linear_kernel(x_ref, w_ref, wn_ref, cos_ref):
    x = x_ref[...].astype(jnp.float32)   # (B, in_f)   whole batch, resident
    w = w_ref[...].astype(jnp.float32)   # (in_f, TN)  one out-feature tile

    # F.normalize(input, dim=-1): multiply-by-rsqrt (EUP) with eps^2 clamp on
    # the squared norm -- equivalent to max(||row||, eps) since sqrt is monotone.
    x_sq = jnp.sum(x * x, axis=-1, keepdims=True)
    xn = x * jax.lax.rsqrt(jnp.maximum(x_sq, _EPS * _EPS))

    # F.normalize(weight, dim=0): per-column norm, independent per tile.
    w_sq = jnp.sum(w * w, axis=0, keepdims=True)
    wn = w * jax.lax.rsqrt(jnp.maximum(w_sq, _EPS * _EPS))

    wn_ref[...] = wn.astype(wn_ref.dtype)

    # Feed the MXU in bf16 (native input width on v5e/v6e/v7x), accumulate f32.
    cos_ref[...] = jnp.dot(
        xn.astype(jnp.bfloat16),
        wn.astype(jnp.bfloat16),
        preferred_element_type=jnp.float32,
    ).astype(cos_ref.dtype)


def _pick_tile(in_f, out_pad):
    # Largest lane-dense (multiple-of-128) TN such that the double-buffered
    # W-in + wn-out f32 blocks stay within the conservative VMEM budget.
    per_lane_col_bytes = in_f * 4 * 4   # (W in + wn out) x double buffer, f32
    tn = max(_LANE, (_VMEM_BUDGET // per_lane_col_bytes) // _LANE * _LANE)
    return int(min(_TN_MAX, tn, out_pad))


def cosine_linear(x, weight):
    """Returns (w_normalized, cos_theta) exactly like CosineLinear.forward."""
    B, in_f = x.shape
    in_f_w, out_f = weight.shape
    assert in_f == in_f_w

    cos_dtype = jnp.result_type(x.dtype, weight.dtype)

    # Pad out_features to a lane-dense multiple of the tile width so wn/cos
    # writebacks are full (unmasked) vector stores. Zero pad columns have zero
    # norm -> clamped to eps -> wn pad cols = 0 and cos pad cols = 0; sliced
    # off after the call, so padding is exact.
    out_pad = pl.cdiv(max(out_f, _LANE), _LANE) * _LANE
    tn = _pick_tile(in_f, out_pad)
    out_pad = pl.cdiv(out_pad, tn) * tn

    w_pad = weight
    if out_pad != out_f:
        w_pad = jnp.pad(weight, ((0, 0), (0, out_pad - out_f)))

    grid = (out_pad // tn,)

    wn_full, cos_full = pl.pallas_call(
        _cosine_linear_kernel,
        grid=grid,
        in_specs=[
            # x stays whole & resident (needed in full for row norms; tiny).
            pl.BlockSpec((B, in_f), lambda j: (0, 0)),
            # W is streamed tile-by-tile along out_features (double-buffered).
            pl.BlockSpec((in_f, tn), lambda j: (0, j)),
        ],
        out_specs=[
            pl.BlockSpec((in_f, tn), lambda j: (0, j)),
            pl.BlockSpec((B, tn), lambda j: (0, j)),
        ],
        out_shape=[
            jax.ShapeDtypeStruct((in_f, out_pad), weight.dtype),
            jax.ShapeDtypeStruct((B, out_pad), cos_dtype),
        ],
        compiler_params=pltpu.CompilerParams(
            dimension_semantics=("parallel",),
        ),
    )(x, w_pad)

    if out_pad != out_f:
        wn_full = wn_full[:, :out_f]
        cos_full = cos_full[:, :out_f]
    return wn_full, cos_full


def _reference(x, weight):
    xn = x / jnp.maximum(jnp.linalg.norm(x, axis=-1, keepdims=True), _EPS)
    wn = weight / jnp.maximum(jnp.linalg.norm(weight, axis=0, keepdims=True), _EPS)
    return wn, xn @ wn


if __name__ == "__main__":
    key = jax.random.PRNGKey(0)
    k_x, k_w = jax.random.split(key)

    B, in_features, out_features = 2, 32, 16

    x = jax.random.normal(k_x, (B, in_features), dtype=jnp.float32)

    # Deterministic xavier_uniform_ init for weight (in_features, out_features):
    # torch fan_in = size(1) = out_features, fan_out = size(0) = in_features
    bound = (6.0 / (in_features + out_features)) ** 0.5
    weight = jax.random.uniform(
        k_w, (in_features, out_features), dtype=jnp.float32,
        minval=-bound, maxval=bound,
    )

    w_norm, cos_theta = cosine_linear(x, weight)
    jax.block_until_ready((w_norm, cos_theta))

    w_ref, cos_ref = _reference(x, weight)
    assert w_norm.shape == (in_features, out_features)
    assert cos_theta.shape == (B, out_features)
    assert w_norm.dtype == weight.dtype
    # wn is computed fully in f32 -> tight tolerance.
    assert jnp.allclose(w_norm, w_ref, atol=1e-5, rtol=1e-5)
    # cos_theta uses bf16 MXU operands (f32 accumulate) -> bf16-level tolerance.
    assert jnp.allclose(cos_theta, cos_ref, atol=2e-2, rtol=2e-2)

    print("KERNEL_OK")
</pallas_src>

<mosaic_0001>
module attributes {stable_mosaic.version = 11 : i64} {
  func.func @_cosine_linear_kernel(%arg0: i32, %arg1: memref<2x32xf32, #tpu.memory_space<vmem>>, %arg2: memref<32x128xf32, #tpu.memory_space<vmem>>, %arg3: memref<32x128xf32, #tpu.memory_space<vmem>>, %arg4: memref<2x128xf32, #tpu.memory_space<vmem>>) attributes {dimension_semantics = [#tpu.dimension_semantics<parallel>], iteration_bounds = array<i64: 1>, scalar_prefetch = 0 : i64, scratch_operands = 0 : i64, tpu.core_type = #tpu.core_type<tc>, window_params = [{pipeline_mode = #tpu.pipeline_mode<synchronous>, transform_indices = @transform_0, window_bounds = array<i64: 2, 32>}, {transform_indices = @transform_1, window_bounds = array<i64: 32, 128>}, {transform_indices = @transform_2, window_bounds = array<i64: 32, 128>}, {transform_indices = @transform_3, window_bounds = array<i64: 2, 128>}]} {
    %c0 = arith.constant 0 : index
    %c0_0 = arith.constant 0 : index
    %0 = vector.load %arg1[%c0, %c0_0] : memref<2x32xf32, #tpu.memory_space<vmem>>, vector<2x32xf32>
    %c0_1 = arith.constant 0 : index
    %c0_2 = arith.constant 0 : index
    %1 = vector.load %arg2[%c0_1, %c0_2] : memref<32x128xf32, #tpu.memory_space<vmem>>, vector<32x128xf32>
    %2 = arith.mulf %0, %0 : vector<2x32xf32>
    %cst = arith.constant dense<0.000000e+00> : vector<2xf32>
    %3 = vector.multi_reduction <add>, %2, %cst [1] : vector<2x32xf32> to vector<2xf32>
    %4 = vector.shape_cast %3 : vector<2xf32> to vector<2x1xf32>
    %cst_3 = arith.constant 1.000000e-24 : f32
    %5 = vector.broadcast %cst_3 : f32 to vector<2x1xf32>
    %6 = arith.maximumf %4, %5 : vector<2x1xf32>
    %7 = math.rsqrt %6 : vector<2x1xf32>
    %8 = vector.broadcast %7 : vector<2x1xf32> to vector<2x32xf32>
    %9 = arith.mulf %0, %8 : vector<2x32xf32>
    %10 = arith.mulf %1, %1 : vector<32x128xf32>
    %cst_4 = arith.constant dense<0.000000e+00> : vector<128xf32>
    %11 = vector.multi_reduction <add>, %10, %cst_4 [0] : vector<32x128xf32> to vector<128xf32>
    %12 = vector.shape_cast %11 : vector<128xf32> to vector<1x128xf32>
    %cst_5 = arith.constant 1.000000e-24 : f32
    %13 = vector.broadcast %cst_5 : f32 to vector<1x128xf32>
    %14 = arith.maximumf %12, %13 : vector<1x128xf32>
    %15 = math.rsqrt %14 : vector<1x128xf32>
    %16 = vector.broadcast %15 : vector<1x128xf32> to vector<32x128xf32>
    %17 = arith.mulf %1, %16 : vector<32x128xf32>
    %c0_6 = arith.constant 0 : index
    %c0_7 = arith.constant 0 : index
    %18 = vector.load %arg3[%c0_6, %c0_7] : memref<32x128xf32, #tpu.memory_space<vmem>>, vector<32x128xf32>
    tpu.vector_store %arg3[%c0_6, %c0_7], %17 {strides = array<i32>} : memref<32x128xf32, #tpu.memory_space<vmem>>, vector<32x128xf32>,
    %19 = arith.truncf %9 : vector<2x32xf32> to vector<2x32xbf16>
    %20 = arith.truncf %17 : vector<32x128xf32> to vector<32x128xbf16>
    %cst_8 = arith.constant dense<0.000000e+00> : vector<2x128xf32>
    %21 = tpu.matmul %19, %20, %cst_8 {dimension_numbers = #tpu.dot_dimension_numbers<[1], [0], [0], [1], [0, 0, 1, 1], [], []>} : vector<2x32xbf16>, vector<32x128xbf16>, vector<2x128xf32> -> vector<2x128xf32>
    %c0_9 = arith.constant 0 : index
    %c0_10 = arith.constant 0 : index
    %22 = vector.load %arg4[%c0_9, %c0_10] : memref<2x128xf32, #tpu.memory_space<vmem>>, vector<2x128xf32>
    tpu.vector_store %arg4[%c0_9, %c0_10], %21 {strides = array<i32>} : memref<2x128xf32, #tpu.memory_space<vmem>>, vector<2x128xf32>,
    return
  }
  func.func @transform_0(%arg0: i32) -> (i32, i32) {
    %c0_i32 = arith.constant 0 : i32
    %c0_i32_0 = arith.constant 0 : i32
    %c0_i32_1 = arith.constant 0 : i32
    return %c0_i32, %c0_i32_0 : i32, i32
  }
  func.func @transform_1(%arg0: i32) -> (i32, i32) {
    %c0_i32 = arith.constant 0 : i32
    %c0_i32_0 = arith.constant 0 : i32
    return %c0_i32, %arg0 : i32, i32
  }
  func.func @transform_2(%arg0: i32) -> (i32, i32) {
    %c0_i32 = arith.constant 0 : i32
    %c0_i32_0 = arith.constant 0 : i32
    return %c0_i32, %arg0 : i32, i32
  }
  func.func @transform_3(%arg0: i32) -> (i32, i32) {
    %c0_i32 = arith.constant 0 : i32
    %c0_i32_0 = arith.constant 0 : i32
    return %c0_i32, %arg0 : i32, i32
  }
}

</mosaic_0001>

<llo_original>
// kernel: tpu_custom_call.1
$region0: #{tpu_custom_call.1}
  #allocation0 [shape = 'u32[]', space=smem, size = 0x4, offset = 0x4, fixed_abs, tag = 'smem constant byte address 0x4 - core index']
  #allocation1 [shape = 'u32[144,128]{1,0:T(1,128)}', space=vmem, size = 0x12000, scoped, tag = 'internal scratch']
  %s0 = inlined_call_operand.hbm [shape: f32[2,32], index: 0, kind: input, shape index: {}]
  %s1 = inlined_call_operand.hbm [shape: f32[32,128], index: 1, kind: input, shape index: {}]
  %s2 = inlined_call_operand.hbm [shape: f32[32,128], index: 2, kind: output, shape index: {0}]
  %s3 = inlined_call_operand.hbm [shape: f32[2,128], index: 3, kind: output, shape index: {1}]
  %4 = xla_tuple %s2, %s3
  %s5 = sld [smem:[#allocation0]]
  $region34: #{tpu_custom_call.1} parent=0
    _
  %s7 = ssub.s32 1, %s5
  %s8 = scalar_select 0, %s7, %s5
  $region1: #{tpu_custom_call.1} parent=0
    #allocation2 [shape = 'u8[1024]{0}', space=vmem, size = 0x400, scoped, tag = 'input window, operand 0, single buffered']
    #allocation3 [shape = 's32[1]{0}', space=sflag, size = 0x4, scoped, tag = 'scoped memory for tpu_custom_call.1']
    #allocation4 [shape = 's32[1]{0}', space=sflag, size = 0x4, scoped, tag = 'scoped memory for tpu_custom_call.1']
    #allocation5 [shape = 'u8[16384]{0}', space=vmem, size = 0x4000, scoped, tag = 'input window, operand 1, single buffered']
    #allocation6 [shape = 's32[1]{0}', space=sflag, size = 0x4, scoped, tag = 'scoped memory for tpu_custom_call.1']
    #allocation7 [shape = 'u8[16384]{0}', space=vmem, size = 0x4000, scoped, tag = 'output window, operand 0, single buffered']
    #allocation8 [shape = 'u8[1024]{0}', space=vmem, size = 0x400, scoped, tag = 'output window, operand 1, single buffered']
    #allocation9 [shape = 's32[1]{0}', space=sflag, size = 0x4, scoped, tag = 'scoped memory for tpu_custom_call.1']
    %9 = vsyncpa [#allocation3], 0
    %10 = vsyncpa [#allocation6], 0
    %11 = vsyncpa [#allocation4], 0
    %12 = vsyncpa [#allocation9], 0
    // Predicated region
    $region2: #{tpu_custom_call.1} parent=1 // pred_check
      _
    $region3: #{tpu_custom_call.1} parent=1 // pred_check_branch
      %14 = sbr.rel (0) target = $region5
    $region4: #{tpu_custom_call.1} parent=1 // pred_region
      %s16 = ssub.s32 32, 32
      %17 = vsyncadd [#allocation3], %s16
      %s19 = sshll.u32 [#allocation2], 4
      %s20 = int_to_ptr.vmem [resolvable:$true] %s19
      %22 = dma.hbm_to_vmem [thread:$0]  %s0, 32, %s20, [#allocation3]
    $region5: #{tpu_custom_call.1} parent=1 // pred_fallthru
      _
    // Predicated region
    $region6: #{tpu_custom_call.1} parent=1 // pred_check
      _
    $region7: #{tpu_custom_call.1} parent=1 // pred_check_branch
      %24 = sbr.rel (0) target = $region9
    $region8: #{tpu_custom_call.1} parent=1 // pred_region
      %s26 = ssub.s32 512, 512
      %27 = vsyncadd [#allocation6], %s26
      %s28 = sshll.u32 [#allocation5], 4
      %s29 = int_to_ptr.vmem [resolvable:$true] %s28
      %34 = dma.hbm_to_vmem [thread:$0]  %s1, 512, %s29, [#allocation6], 128, 128, 8
    $region9: #{tpu_custom_call.1} parent=1 // pred_fallthru
      _
    // Predicated region
    $region10: #{tpu_custom_call.1} parent=1 // pred_check
      _
    $region11: #{tpu_custom_call.1} parent=1 // pred_check_branch
      %36 = sbr.rel (0) target = $region13
    $region12: #{tpu_custom_call.1} parent=1 // pred_region
      %37 = dma.done [#allocation3], 32
    $region13: #{tpu_custom_call.1} parent=1 // pred_fallthru
      _
    // Predicated region
    $region14: #{tpu_custom_call.1} parent=1 // pred_check
      _
    $region15: #{tpu_custom_call.1} parent=1 // pred_check_branch
      %39 = sbr.rel (0) target = $region17
    $region16: #{tpu_custom_call.1} parent=1 // pred_region
      %40 = dma.done [#allocation6], 512
    $region17: #{tpu_custom_call.1} parent=1 // pred_fallthru
      _
    %v42 = vld [vmem:[#allocation2] sm:$0x3]
    %v43 = vld [vmem:[#allocation5] sm:$0xff]
    %v44 = vld [vmem:[#allocation5 + $0x8] sm:$0xff]
    %v45 = vld [vmem:[#allocation5 + $0x10] sm:$0xff]
    %v46 = vld [vmem:[#allocation5 + $0x18] sm:$0xff]
    %v47 = vmul.f32 %v42, %v42
    %vm48 = vcmask 254976
    %v49 = vsel %vm48, %v47, 0.0
    %50 = vadd.xlane.f32.xlu0 %v49
    %v51 = vpop.xlane.xlu0 %50
    %v52 = vmax.f32 %v51, 1e-24
    %v53 = vrsqrt.pop %v52
    %v54 = vmul.f32 %v42, %v53
    %v55 = vmul.f32 %v43, %v43
    %v56 = vmul.f32 %v44, %v44
    %v57 = vmul.f32 %v45, %v45
    %v58 = vmul.f32 %v46, %v46
    %v59 = vadd.f32 %v55, %v56
    %v60 = vadd.f32 %v59, %v57
    %v61 = vadd.f32 %v60, %v58
    %v62 = vrot.slane %v61, 4
    %v63 = vadd.f32 %v61, %v62
    %v64 = vrot.slane %v63, 2
    %v65 = vadd.f32 %v63, %v64
    %v66 = vrot.slane %v65, 1
    %v67 = vadd.f32 %v65, %v66
    %v68 = vmax.f32 %v67, 1e-24
    %v69 = vrsqrt.pop %v68
    %v70 = vmul.f32 %v43, %v69
    %v71 = vmul.f32 %v44, %v69
    %v72 = vmul.f32 %v45, %v69
    %v73 = vmul.f32 %v46, %v69
    %74 = vst [vmem:[#allocation7] sm:$0xff] %v70
    %75 = vst [vmem:[#allocation7 + $0x8] sm:$0xff] %v71
    %76 = vst [vmem:[#allocation7 + $0x10] sm:$0xff] %v72
    %77 = vst [vmem:[#allocation7 + $0x18] sm:$0xff] %v73
    %v78 = vpack.c.bf16 %v54, %v54
    %v79 = vpack.c.bf16 %v71, %v70
    %v80 = vpack.c.bf16 %v73, %v72
    %vm81 = vcmask 261120
    %v83 = vsel %vm81, %v78, 0
    %85 = vmatprep.subr.bf16.mxu0 0
    %86 = vmatpush1.bf16.msra.mxu0 0
    %87 = vmatprep.subr.bf16.mxu0 0
    %88 = vmatpush1.bf16.msra.mxu0 0
    %89 = vmatprep.subr.bf16.mxu0 0
    %90 = vmatpush1.bf16.msra.mxu0 0
    %91 = vmatprep.subr.bf16.mxu0 0
    %92 = vmatpush1.bf16.msra.mxu0 0
    %93 = vmatprep.subr.bf16.mxu0 0
    %94 = vmatpush1.bf16.msra.mxu0 0
    %95 = vmatprep.subr.bf16.mxu0 0
    %96 = vmatpush1.bf16.msra.mxu0 0
    %97 = vmatprep.subr.bf16.mxu0 0
    %98 = vmatpush1.bf16.msra.mxu0 %v80
    %99 = vmatprep.subr.bf16.mxu0 0
    %100 = vmatpush1.bf16.msra.mxu0 %v79
    %101 = vmatprep.subr.bf16.mxu0 0
    %102 = vmatpush2.bf16.msra.mxu0 0
    %103 = vmatprep.subr.bf16.mxu0 0
    %104 = vmatpush2.bf16.msra.mxu0 0
    %105 = vmatprep.subr.bf16.mxu0 0
    %106 = vmatpush2.bf16.msra.mxu0 0
    %107 = vmatprep.subr.bf16.mxu0 0
    %108 = vmatpush2.bf16.msra.mxu0 0
    %109 = vmatprep.subr.bf16.mxu0 0
    %110 = vmatpush2.bf16.msra.mxu0 0
    %111 = vmatprep.subr.bf16.mxu0 0
    %112 = vmatpush2.bf16.msra.mxu0 0
    %113 = vmatprep.subr.bf16.mxu0 0
    %114 = vmatpush2.bf16.msra.mxu0 0
    %115 = vmatprep.subr.bf16.mxu0 0
    %116 = vmatpush2.bf16.msra.mxu0 0
    %117 = vmatprep.mubr.bf16.mxu0 0
    %118 = vmatmul.mubr.bf16.gmra.mxu0 %v83
    %v119 = vpop.f32.mrf.mxu0
    %v120 = vadd.f32 0.0, %v119
    %v121 = vpop.f32.mrf.mxu0
    %v122 = vpop.f32.mrf.mxu0
    %v123 = vpop.f32.mrf.mxu0
    %124 = vdwg.mxu0
    %125 = vst [vmem:[#allocation8] sm:$0x3] %v120
    // Predicated region
    $region18: #{tpu_custom_call.1} parent=1 // pred_check
      _
    $region19: #{tpu_custom_call.1} parent=1 // pred_check_branch
      %127 = sbr.rel (0) target = $region21
    $region20: #{tpu_custom_call.1} parent=1 // pred_region
      %s129 = ssub.s32 512, 512
      %130 = vsyncadd [#allocation4], %s129
      %s131 = sshll.u32 [#allocation7], 4
      %s132 = int_to_ptr.vmem [resolvable:$true] %s131
      %137 = dma.vmem_to_hbm [thread:$0]  %s132, 512, %s2, [#allocation4], 128, 128, 8
    $region21: #{tpu_custom_call.1} parent=1 // pred_fallthru
      _
    // Predicated region
    $region22: #{tpu_custom_call.1} parent=1 // pred_check
      _
    $region23: #{tpu_custom_call.1} parent=1 // pred_check_branch
      %139 = sbr.rel (0) target = $region25
    $region24: #{tpu_custom_call.1} parent=1 // pred_region
      %s141 = ssub.s32 32, 32
      %142 = vsyncadd [#allocation9], %s141
      %s144 = sshll.u32 [#allocation8], 4
      %s145 = int_to_ptr.vmem [resolvable:$true] %s144
      %147 = dma.vmem_to_hbm [thread:$0]  %s145, 32, %s3, [#allocation9]
    $region25: #{tpu_custom_call.1} parent=1 // pred_fallthru
      _
    // Predicated region
    $region26: #{tpu_custom_call.1} parent=1 // pred_check
      _
    $region27: #{tpu_custom_call.1} parent=1 // pred_check_branch
      %149 = sbr.rel (0) target = $region29
    $region28: #{tpu_custom_call.1} parent=1 // pred_region
      %150 = dma.done [#allocation4], 512
    $region29: #{tpu_custom_call.1} parent=1 // pred_fallthru
      _
    // Predicated region
    $region30: #{tpu_custom_call.1} parent=1 // pred_check
      _
    $region31: #{tpu_custom_call.1} parent=1 // pred_check_branch
      %152 = sbr.rel (0) target = $region33
    $region32: #{tpu_custom_call.1} parent=1 // pred_region
      %153 = dma.done [#allocation9], 32
    $region33: #{tpu_custom_call.1} parent=1 // pred_fallthru
      _
    %154 = vsyncpa [#allocation3], 1
    %155 = vsyncpa [#allocation6], 1
    %156 = vsyncpa [#allocation4], 1
    %157 = vsyncpa [#allocation9], 1

</llo_original>
